<compile_context>
chip_gen: v7x
topology: tpu7x:2x2x1
jax: 0.10.0
libtpu: 0.0.40
codegen_flags: <defaults>
</compile_context>

<pallas_src>
import math
import functools

import jax
import jax.numpy as jnp
from jax import lax
from jax.experimental import pallas as pl
from jax.experimental.pallas import tpu as pltpu


def _mha_kernel(q_ref, k_ref, v_ref, wp_ref, bp_ref, o_ref, acc_ref, *, hpp):
    """Grid = (batch, q_tile, head_group).  The head-group axis (innermost,
    'arbitrary') is a reduction: each step adds its heads' output-projection
    contribution to acc_ref; the last head group writes the tile out."""
    hg = pl.program_id(2)
    n_hg = pl.num_programs(2)
    cdt = q_ref.dtype                            # compute dtype (bfloat16)

    # Per-head attention (static unroll over the hpp heads of this group).
    ctxs = []
    for j in range(hpp):
        q = q_ref[0, j]                          # (TQ, D)  pre-scaled by 1/sqrt(E)
        k = k_ref[0, j]                          # (N,  D)
        v = v_ref[0, j]                          # (N,  D)
        # energy = q @ k.T  (contract last dims of both; no explicit transpose)
        energy = lax.dot_general(q, k, (((1,), (1,)), ((), ())),
                                 preferred_element_type=jnp.float32)   # (TQ, N) f32
        # TODO(synk): for long N, tile K/V with an online-softmax (flash) inner
        # loop to bound the (TQ, N) f32 intermediates (v7x has only 64 MiB VMEM).
        m = jnp.max(energy, axis=-1, keepdims=True)
        p = jnp.exp(energy - m)
        att = p * pl.reciprocal(jnp.sum(p, axis=-1, keepdims=True), approx=True)
        # TODO(synk): attention dropout (att_drop) and the mask path are omitted
        # (eval mode, mask=None in the reference forward).
        ctxs.append(jnp.dot(att.astype(cdt), v,
                            preferred_element_type=jnp.float32).astype(cdt))  # (TQ, D)

    # Heads of a group are stacked along lanes so the output projection is one
    # (TQ, hpp*D) @ (hpp*D, E) matmul (256-deep contraction on v6e/v7x when hpp=2).
    ctx = ctxs[0] if hpp == 1 else jnp.concatenate(ctxs, axis=-1)       # (TQ, hpp*D)
    contrib = jnp.dot(ctx, wp_ref[hg],
                      preferred_element_type=jnp.float32)               # (TQ, E) f32

    @pl.when(hg == 0)
    def _():
        acc_ref[...] = contrib + bp_ref[...]     # direct write; output bias folded here

    @pl.when(hg > 0)
    def _():
        acc_ref[...] += contrib

    @pl.when(hg == n_hg - 1)
    def _():
        # Output kept in f32 to match the reference module; switch out_shape to
        # bf16 if the consumer tolerates it (halves output HBM traffic).
        o_ref[0] = acc_ref[...].astype(o_ref.dtype)


def _chip_settings(head_dim, num_heads):
    """Generation-aware q-tile cap, VMEM limit and heads-per-step."""
    kind = ""
    try:
        kind = jax.devices()[0].device_kind.lower()
    except Exception:
        pass
    if "v7" in kind:                              # 64 MiB VMEM, 256-wide MXU
        max_tq, vmem, pair = 128, 48 * 1024 * 1024, True
    elif "v6" in kind:                            # 128 MiB VMEM, 256-wide MXU
        max_tq, vmem, pair = 256, 96 * 1024 * 1024, True
    elif "v5" in kind:                            # 128 MiB VMEM, 128-wide MXU
        max_tq, vmem, pair = 512, 100 * 1024 * 1024, False
    else:                                         # unknown: conservative defaults
        max_tq, vmem, pair = 128, 48 * 1024 * 1024, False
    hpp = 2 if (pair and head_dim <= 128 and num_heads % 2 == 0) else 1
    return max_tq, vmem, hpp


def _pick_q_tile(n, max_tq):
    if n <= max_tq:
        return n
    for t in range(max_tq, 7, -1):                # largest 8-aligned divisor of n
        if n % t == 0 and t % 8 == 0:
            return t
    return n


def _prep_inputs(x, params, emb_size, num_heads, hpp, compute_dtype):
    """Fused QKV projection (single XLA matmul, done ONCE) + head split, plus
    head-grouped output-projection weights for the kernel."""
    B, N, E = x.shape
    H, D = num_heads, E // num_heads
    f32 = jnp.float32
    scale = 1.0 / math.sqrt(float(E))             # module scales by sqrt(emb_size)

    wq = params["wq"].astype(f32) * scale         # fold softmax scale into Wq / bq
    bq = params["bq"].astype(f32)[0] * scale
    w_qkv = jnp.concatenate([wq, params["wk"].astype(f32),
                             params["wv"].astype(f32)], axis=0)          # (3E, E)
    b_qkv = jnp.concatenate([bq, params["bk"].astype(f32)[0],
                             params["bv"].astype(f32)[0]], axis=0)       # (3E,)

    qkv = jnp.dot(x.astype(compute_dtype), w_qkv.T.astype(compute_dtype),
                  preferred_element_type=jnp.float32) + b_qkv            # (B, N, 3E)
    q, k, v = jnp.split(qkv, 3, axis=-1)

    def heads(t):                                 # (B, N, E) -> (B, H, N, D)
        return t.reshape(B, N, H, D).transpose(0, 2, 1, 3).astype(compute_dtype)

    # Output projection weights: pre-transposed, head-split, grouped by hpp so
    # wp_g[hg] is the (hpp*D, E) slab matching the in-kernel ctx lane order.
    wp_g = (params["wp"].astype(f32).T.reshape(H, D, E)
            .reshape(H // hpp, hpp * D, E).astype(compute_dtype))
    bp = params["bp"].astype(f32)                 # (1, E)
    return heads(q), heads(k), heads(v), wp_g, bp


def multi_head_attention(x, params, *, emb_size, num_heads, q_tile=None,
                         compute_dtype=jnp.bfloat16):
    """x: (B, N, E) float32.  params: dict of nn.Linear-convention weights."""
    B, N, E = x.shape
    assert E == emb_size and E % num_heads == 0
    D = E // num_heads

    max_tq, vmem_limit, hpp = _chip_settings(D, num_heads)
    tq = _pick_q_tile(N, max_tq) if q_tile is None else q_tile
    assert N % tq == 0 and (tq == N or tq % 8 == 0), "q tile must divide N (8-aligned)"

    q_h, k_h, v_h, wp_g, bp = _prep_inputs(
        x, params, emb_size, num_heads, hpp, compute_dtype)

    Hg = num_heads // hpp
    grid = (B, N // tq, Hg)                       # head groups = innermost reduction
    kernel = functools.partial(_mha_kernel, hpp=hpp)

    return pl.pallas_call(
        kernel,
        out_shape=jax.ShapeDtypeStruct((B, N, E), jnp.float32),
        grid=grid,
        in_specs=[
            pl.BlockSpec((1, hpp, tq, D), lambda b, qi, hg: (b, hg, qi, 0)),   # Q tile
            pl.BlockSpec((1, hpp, N, D),  lambda b, qi, hg: (b, hg, 0, 0)),    # K (full seq, this group)
            pl.BlockSpec((1, hpp, N, D),  lambda b, qi, hg: (b, hg, 0, 0)),    # V (full seq, this group)
            pl.BlockSpec((Hg, hpp * D, E), lambda b, qi, hg: (0, 0, 0)),       # Wp (resident, all heads)
            pl.BlockSpec((1, E),           lambda b, qi, hg: (0, 0)),          # bp
        ],
        out_specs=pl.BlockSpec((1, tq, E), lambda b, qi, hg: (b, qi, 0)),
        scratch_shapes=[pltpu.VMEM((tq, E), jnp.float32)],                     # head accumulator
        compiler_params=pltpu.CompilerParams(
            dimension_semantics=("parallel", "parallel", "arbitrary"),
            vmem_limit_bytes=vmem_limit),
    )(q_h, k_h, v_h, wp_g, bp)


def _reference(x, params, *, emb_size, num_heads):
    """Plain-JAX f32 reference mirroring the PyTorch forward (eval, mask=None)."""
    B, N, E = x.shape
    D = E // num_heads

    def lin(x_, w, b):
        return x_ @ w.T + b

    q = lin(x, params["wq"], params["bq"][0])
    k = lin(x, params["wk"], params["bk"][0])
    v = lin(x, params["wv"], params["bv"][0])
    rearr = lambda t: t.reshape(B, N, num_heads, D).transpose(0, 2, 1, 3)  # b n (h d) -> b h n d
    q, k, v = rearr(q), rearr(k), rearr(v)
    energy = jnp.einsum("bhqd,bhkd->bhqk", q, k)
    att = jax.nn.softmax(energy / math.sqrt(float(emb_size)), axis=-1)
    out = jnp.einsum("bhal,bhlv->bhav", att, v)
    out = out.transpose(0, 2, 1, 3).reshape(B, N, E)                        # b h n d -> b n (h d)
    return lin(out, params["wp"], params["bp"][0])


def _init_params(key, emb_size):
    """nn.Linear-style init: U(-1/sqrt(in), 1/sqrt(in))."""
    bound = 1.0 / math.sqrt(emb_size)
    names = ["wq", "bq", "wk", "bk", "wv", "bv", "wp", "bp"]
    keys = jax.random.split(key, len(names))
    params = {}
    for name, kk in zip(names, keys):
        shape = (emb_size, emb_size) if name.startswith("w") else (1, emb_size)
        params[name] = jax.random.uniform(kk, shape, jnp.float32, -bound, bound)
    return params


if __name__ == "__main__":
    # Small but TPU-friendly shapes: every lane dim (E=256, D=128) is >= 128.
    B, N, emb_size, num_heads = 2, 16, 256, 2
    key = jax.random.PRNGKey(0)
    kx, kp = jax.random.split(key)
    x = jax.random.normal(kx, (B, N, emb_size), dtype=jnp.float32)
    params = _init_params(kp, emb_size)

    out = multi_head_attention(x, params, emb_size=emb_size, num_heads=num_heads)
    out = jax.block_until_ready(out)

    ref = _reference(x, params, emb_size=emb_size, num_heads=num_heads)
    assert out.shape == (B, N, emb_size)
    max_err = float(jnp.max(jnp.abs(out - ref)))
    # bf16 matmul inputs with f32 accumulation -> loosened tolerance vs f32 reference.
    assert jnp.allclose(out, ref, atol=3e-2, rtol=3e-2), f"mismatch vs reference (max abs err {max_err})"

    print("KERNEL_OK")
</pallas_src>

<mosaic_0001>
module attributes {stable_mosaic.version = 11 : i64} {
  func.func @_mha_kernel(%arg0: i32, %arg1: i32, %arg2: i32, %arg3: memref<1x1x16x128xbf16, #tpu.memory_space<vmem>>, %arg4: memref<1x1x16x128xbf16, #tpu.memory_space<vmem>>, %arg5: memref<1x1x16x128xbf16, #tpu.memory_space<vmem>>, %arg6: memref<2x128x256xbf16, #tpu.memory_space<vmem>>, %arg7: memref<1x256xf32, #tpu.memory_space<vmem>>, %arg8: memref<1x16x256xf32, #tpu.memory_space<vmem>>, %arg9: memref<16x256xf32, #tpu.memory_space<vmem>>) attributes {dimension_semantics = [#tpu.dimension_semantics<parallel>, #tpu.dimension_semantics<parallel>, #tpu.dimension_semantics<arbitrary>], iteration_bounds = array<i64: 2, 1, 2>, scalar_prefetch = 0 : i64, scratch_operands = 1 : i64, tpu.core_type = #tpu.core_type<tc>, window_params = [{transform_indices = @transform_0, window_bounds = array<i64: 1, 1, 16, 128>}, {transform_indices = @transform_1, window_bounds = array<i64: 1, 1, 16, 128>}, {transform_indices = @transform_2, window_bounds = array<i64: 1, 1, 16, 128>}, {pipeline_mode = #tpu.pipeline_mode<synchronous>, transform_indices = @transform_3, window_bounds = array<i64: 2, 128, 256>}, {pipeline_mode = #tpu.pipeline_mode<synchronous>, transform_indices = @transform_4, window_bounds = array<i64: 1, 256>}, {transform_indices = @transform_5, window_bounds = array<i64: 1, 16, 256>}]} {
    %c0 = arith.constant 0 : index
    %c0_0 = arith.constant 0 : index
    %c0_1 = arith.constant 0 : index
    %c0_2 = arith.constant 0 : index
    %0 = vector.load %arg3[%c0, %c0_0, %c0_1, %c0_2] : memref<1x1x16x128xbf16, #tpu.memory_space<vmem>>, vector<1x1x16x128xbf16>
    %1 = vector.shape_cast %0 : vector<1x1x16x128xbf16> to vector<16x128xbf16>
    %c0_3 = arith.constant 0 : index
    %c0_4 = arith.constant 0 : index
    %c0_5 = arith.constant 0 : index
    %c0_6 = arith.constant 0 : index
    %2 = vector.load %arg4[%c0_3, %c0_4, %c0_5, %c0_6] : memref<1x1x16x128xbf16, #tpu.memory_space<vmem>>, vector<1x1x16x128xbf16>
    %3 = vector.shape_cast %2 : vector<1x1x16x128xbf16> to vector<16x128xbf16>
    %c0_7 = arith.constant 0 : index
    %c0_8 = arith.constant 0 : index
    %c0_9 = arith.constant 0 : index
    %c0_10 = arith.constant 0 : index
    %4 = vector.load %arg5[%c0_7, %c0_8, %c0_9, %c0_10] : memref<1x1x16x128xbf16, #tpu.memory_space<vmem>>, vector<1x1x16x128xbf16>
    %5 = vector.shape_cast %4 : vector<1x1x16x128xbf16> to vector<16x128xbf16>
    %cst = arith.constant dense<0.000000e+00> : vector<16x16xf32>
    %6 = tpu.matmul %1, %3, %cst {dimension_numbers = #tpu.dot_dimension_numbers<[1], [1], [0], [0], [0, 0, 1, 0], [], []>} : vector<16x128xbf16>, vector<16x128xbf16>, vector<16x16xf32> -> vector<16x16xf32>
    %cst_11 = arith.constant dense<0xFF800000> : vector<16xf32>
    %7 = vector.multi_reduction <maximumf>, %6, %cst_11 [1] : vector<16x16xf32> to vector<16xf32>
    %8 = vector.shape_cast %7 : vector<16xf32> to vector<16x1xf32>
    %9 = vector.broadcast %8 : vector<16x1xf32> to vector<16x16xf32>
    %10 = arith.subf %6, %9 : vector<16x16xf32>
    %11 = math.exp %10 : vector<16x16xf32>
    %cst_12 = arith.constant dense<0.000000e+00> : vector<16xf32>
    %12 = vector.multi_reduction <add>, %11, %cst_12 [1] : vector<16x16xf32> to vector<16xf32>
    %13 = vector.shape_cast %12 : vector<16xf32> to vector<16x1xf32>
    %14 = tpu.reciprocal %13 {approx = true} : vector<16x1xf32> -> vector<16x1xf32>
    %15 = vector.broadcast %14 : vector<16x1xf32> to vector<16x16xf32>
    %16 = arith.mulf %11, %15 : vector<16x16xf32>
    %17 = arith.truncf %16 : vector<16x16xf32> to vector<16x16xbf16>
    %cst_13 = arith.constant dense<0.000000e+00> : vector<16x128xf32>
    %18 = tpu.matmul %17, %5, %cst_13 {dimension_numbers = #tpu.dot_dimension_numbers<[1], [0], [0], [1], [0, 0, 1, 1], [], []>} : vector<16x16xbf16>, vector<16x128xbf16>, vector<16x128xf32> -> vector<16x128xf32>
    %19 = arith.truncf %18 : vector<16x128xf32> to vector<16x128xbf16>
    %20 = arith.index_cast %arg2 : i32 to index
    %c0_14 = arith.constant 0 : index
    %c0_15 = arith.constant 0 : index
    %21 = vector.load %arg6[%20, %c0_14, %c0_15] : memref<2x128x256xbf16, #tpu.memory_space<vmem>>, vector<1x128x256xbf16>
    %22 = vector.shape_cast %21 : vector<1x128x256xbf16> to vector<128x256xbf16>
    %cst_16 = arith.constant dense<0.000000e+00> : vector<16x256xf32>
    %23 = tpu.matmul %19, %22, %cst_16 {dimension_numbers = #tpu.dot_dimension_numbers<[1], [0], [0], [1], [0, 0, 1, 1], [], []>} : vector<16x128xbf16>, vector<128x256xbf16>, vector<16x256xf32> -> vector<16x256xf32>
    %c0_i32 = arith.constant 0 : i32
    %24 = arith.cmpi eq, %arg2, %c0_i32 : i32
    %25 = arith.extui %24 : i1 to i32
    %c0_i32_17 = arith.constant 0 : i32
    %26 = arith.cmpi ne, %25, %c0_i32_17 : i32
    scf.if %26 {
      %c0_21 = arith.constant 0 : index
      %c0_22 = arith.constant 0 : index
      %33 = vector.load %arg7[%c0_21, %c0_22] : memref<1x256xf32, #tpu.memory_space<vmem>>, vector<1x256xf32>
      %34 = vector.broadcast %33 : vector<1x256xf32> to vector<16x256xf32>
      %35 = arith.addf %23, %34 : vector<16x256xf32>
      %c0_23 = arith.constant 0 : index
      %c0_24 = arith.constant 0 : index
      %36 = vector.load %arg9[%c0_23, %c0_24] : memref<16x256xf32, #tpu.memory_space<vmem>>, vector<16x256xf32>
      tpu.vector_store %arg9[%c0_23, %c0_24], %35 {strides = array<i32>} : memref<16x256xf32, #tpu.memory_space<vmem>>, vector<16x256xf32>,
    } else {
    }
    %c0_i32_18 = arith.constant 0 : i32
    %27 = arith.cmpi sgt, %arg2, %c0_i32_18 : i32
    %28 = arith.extui %27 : i1 to i32
    %c0_i32_19 = arith.constant 0 : i32
    %29 = arith.cmpi ne, %28, %c0_i32_19 : i32
    scf.if %29 {
      %c0_21 = arith.constant 0 : index
      %c0_22 = arith.constant 0 : index
      %33 = vector.load %arg9[%c0_21, %c0_22] : memref<16x256xf32, #tpu.memory_space<vmem>>, vector<16x256xf32>
      %34 = arith.addf %33, %23 : vector<16x256xf32>
      %c0_23 = arith.constant 0 : index
      %c0_24 = arith.constant 0 : index
      %35 = vector.load %arg9[%c0_23, %c0_24] : memref<16x256xf32, #tpu.memory_space<vmem>>, vector<16x256xf32>
      tpu.vector_store %arg9[%c0_23, %c0_24], %34 {strides = array<i32>} : memref<16x256xf32, #tpu.memory_space<vmem>>, vector<16x256xf32>,
    } else {
    }
    %c1_i32 = arith.constant 1 : i32
    %30 = arith.cmpi eq, %arg2, %c1_i32 : i32
    %31 = arith.extui %30 : i1 to i32
    %c0_i32_20 = arith.constant 0 : i32
    %32 = arith.cmpi ne, %31, %c0_i32_20 : i32
    scf.if %32 {
      %c0_21 = arith.constant 0 : index
      %c0_22 = arith.constant 0 : index
      %33 = vector.load %arg9[%c0_21, %c0_22] : memref<16x256xf32, #tpu.memory_space<vmem>>, vector<16x256xf32>
      %c0_23 = arith.constant 0 : index
      %c0_24 = arith.constant 0 : index
      %c0_25 = arith.constant 0 : index
      %34 = vector.load %arg8[%c0_23, %c0_24, %c0_25] : memref<1x16x256xf32, #tpu.memory_space<vmem>>, vector<1x16x256xf32>
      %35 = vector.shape_cast %34 : vector<1x16x256xf32> to vector<16x256xf32>
      %36 = vector.shape_cast %33 : vector<16x256xf32> to vector<1x16x256xf32>
      tpu.vector_store %arg8[%c0_23, %c0_24, %c0_25], %36 {strides = array<i32>} : memref<1x16x256xf32, #tpu.memory_space<vmem>>, vector<1x16x256xf32>,
    } else {
    }
    return
  }
  func.func @transform_0(%arg0: i32, %arg1: i32, %arg2: i32) -> (i32, i32, i32, i32) {
    %c0_i32 = arith.constant 0 : i32
    %c0_i32_0 = arith.constant 0 : i32
    return %arg0, %arg2, %arg1, %c0_i32 : i32, i32, i32, i32
  }
  func.func @transform_1(%arg0: i32, %arg1: i32, %arg2: i32) -> (i32, i32, i32, i32) {
    %c0_i32 = arith.constant 0 : i32
    %c0_i32_0 = arith.constant 0 : i32
    %c0_i32_1 = arith.constant 0 : i32
    return %arg0, %arg2, %c0_i32, %c0_i32_0 : i32, i32, i32, i32
  }
  func.func @transform_2(%arg0: i32, %arg1: i32, %arg2: i32) -> (i32, i32, i32, i32) {
    %c0_i32 = arith.constant 0 : i32
    %c0_i32_0 = arith.constant 0 : i32
    %c0_i32_1 = arith.constant 0 : i32
    return %arg0, %arg2, %c0_i32, %c0_i32_0 : i32, i32, i32, i32
  }
  func.func @transform_3(%arg0: i32, %arg1: i32, %arg2: i32) -> (i32, i32, i32) {
    %c0_i32 = arith.constant 0 : i32
    %c0_i32_0 = arith.constant 0 : i32
    %c0_i32_1 = arith.constant 0 : i32
    %c0_i32_2 = arith.constant 0 : i32
    return %c0_i32, %c0_i32_0, %c0_i32_1 : i32, i32, i32
  }
  func.func @transform_4(%arg0: i32, %arg1: i32, %arg2: i32) -> (i32, i32) {
    %c0_i32 = arith.constant 0 : i32
    %c0_i32_0 = arith.constant 0 : i32
    %c0_i32_1 = arith.constant 0 : i32
    return %c0_i32, %c0_i32_0 : i32, i32
  }
  func.func @transform_5(%arg0: i32, %arg1: i32, %arg2: i32) -> (i32, i32, i32) {
    %c0_i32 = arith.constant 0 : i32
    %c0_i32_0 = arith.constant 0 : i32
    return %arg0, %arg1, %c0_i32 : i32, i32, i32
  }
}

</mosaic_0001>

<llo_original>
// kernel: tpu_custom_call.1
$region0: #{tpu_custom_call.1}
  #allocation0 [shape = 'u32[]', space=smem, size = 0x4, offset = 0x4, fixed_abs, tag = 'smem constant byte address 0x4 - core index']
  #allocation1 [shape = 'u32[144,128]{1,0:T(1,128)}', space=vmem, size = 0x12000, scoped, tag = 'internal scratch']
  #allocation2 [shape = 'f32[16,256]{1,0:T(8,128)}', space=vmem, size = 0x4000, scoped, tag = 'scratch operand']
  %s0 = inlined_call_operand.hbm [shape: bf16[2,2,16,128], index: 0, kind: input, shape index: {}]
  %s1 = inlined_call_operand.hbm [shape: bf16[2,2,16,128], index: 1, kind: input, shape index: {}]
  %s2 = inlined_call_operand.hbm [shape: bf16[2,2,16,128], index: 2, kind: input, shape index: {}]
  %s3 = inlined_call_operand.hbm [shape: bf16[2,128,256], index: 3, kind: input, shape index: {}]
  %s4 = inlined_call_operand.vmem [shape: f32[1,256], index: 4, kind: input, shape index: {}]
  %s5 = inlined_call_operand.hbm [shape: f32[2,16,256], index: 5, kind: output, shape index: {}]
  %s6 = sld [smem:[#allocation0]]
  $region81: #{tpu_custom_call.1} parent=0
    _
  %s8 = ssub.s32 1, %s6
  %s9 = scalar_select 0, %s8, %s6
  $region1: #{tpu_custom_call.1} parent=0
    #allocation3 [shape = 'u8[8192]{0}', space=vmem, size = 0x2000, scoped, tag = 'input window, operand 0']
    #allocation4 [shape = 's32[2]{0}', space=sflag, size = 0x8, scoped, tag = 'scoped memory for tpu_custom_call.1']
    #allocation5 [shape = 's32[2]{0}', space=sflag, size = 0x8, scoped, tag = 'scoped memory for tpu_custom_call.1']
    #allocation6 [shape = 'u8[8192]{0}', space=vmem, size = 0x2000, scoped, tag = 'input window, operand 1']
    #allocation7 [shape = 's32[2]{0}', space=sflag, size = 0x8, scoped, tag = 'scoped memory for tpu_custom_call.1']
    #allocation8 [shape = 'u8[8192]{0}', space=vmem, size = 0x2000, scoped, tag = 'input window, operand 2']
    #allocation9 [shape = 'u8[131072]{0}', space=vmem, size = 0x20000, scoped, tag = 'input window, operand 3, single buffered']
    #allocation10 [shape = 's32[1]{0}', space=sflag, size = 0x4, scoped, tag = 'scoped memory for tpu_custom_call.1']
    #allocation11 [shape = 'u8[32768]{0}', space=vmem, size = 0x8000, scoped, tag = 'output window, operand 0']
    %10 = vsyncpa [#allocation4], 0
    %s11 = scalar_lea.sflag [#allocation4], 1
    %12 = vsyncpa %s11, 0
    %13 = vsyncpa [#allocation7], 0
    %s14 = scalar_lea.sflag [#allocation7], 1
    %15 = vsyncpa %s14, 0
    %16 = vsyncpa [#allocation10], 0
    %17 = vsyncpa [#allocation5], 0
    %s18 = scalar_lea.sflag [#allocation5], 1
    %19 = vsyncpa %s18, 0
    loop: start=0, step=1, limit=6
    $region2: #{tpu_custom_call.1} parent=1 // loop_pre_header
      _
    $region3: #{tpu_custom_call.1} parent=1 // loop_header
      %s21 = sphi 0, %s25
      %p22 = scmp.ge.s32.totalorder %s21, 6
      %s28 = sphi 0, %s47
      %s29 = sphi 0, %s43
      %s30 = sphi 0, %s39
      %s31 = sphi 0, %s28
      %s32 = sphi 0, %s29
      %s33 = sphi 0, %s30
      %s34 = sphi 0, %s31
      %s35 = sphi 0, %s32
      %s36 = sphi 0, %s33
      %s54 = sphi 0, %s56
      %s57 = sphi 0, %s54
      %s58 = sphi 0, %s57
      %s74 = sphi 0, %s58
      %s82 = sphi 0, %s84
      %s85 = sphi 0, %s82
      %s86 = sphi 0, %s85
      %s102 = sphi 0, %s86
      %s110 = sphi 0, %s112
      %s113 = sphi 0, %s110
      %s114 = sphi 0, %s113
      %s130 = sphi 0, %s114
      %s134 = sphi 0, %s134
      %s136 = sphi 0, %s134
      %s137 = sphi 0, %s136
      %s151 = sphi 0, %s137
      %s155 = sphi 0, %s155
      %s157 = sphi 0, %s155
      %s158 = sphi 0, %s157
      %s172 = sphi 0, %s158
      %s180 = sphi 0, %s182
      %s183 = sphi 0, %s180
      %s184 = sphi 0, %s183
      %s200 = sphi 0, %s184
    $region4: #{tpu_custom_call.1} parent=1 // loop_header_branch
      %24 = sbr.rel (%p22) target = $region8
    $region5: #{tpu_custom_call.1} parent=1 // loop_body
      %s26 = ssub.s32 %s21, 1
      %s27 = ssub.s32 %s21, 2
      %s37 = sadd.s32 1, %s30
      %p38 = scmp.ge.s32.totalorder %s37, 2
      %s39 = scalar_select %p38, 0, %s37
      %s40 = sadd.s32 1, %s29
      %s41 = scalar_select %p38, %s40, %s29
      %p42 = scmp.ge.s32.totalorder %s41, 1
      %s43 = scalar_select %p42, 0, %s41
      %s44 = sadd.s32 1, %s28
      %s45 = scalar_select %p42, %s44, %s28
      %p46 = scmp.ge.s32.totalorder %s45, 2
      %s47 = scalar_select %p46, 0, %s45
      %s48 = ssub.s32 %s28, %s47
      %s49 = ssub.s32 %s30, %s39
      %s50 = sor.u32 %s48, %s49
      %s51 = ssub.s32 %s29, %s43
      %s52 = sor.u32 %s50, %s51
      %p53 = scmp.eq.s32.totalorder %s52, 0
      %s55 = sadd.s32 %s54, 1
      %s56 = scalar_select %p53, %s54, %s55
      %p59 = pneg %p53
      %p60 = scmp.eq.s32.totalorder %s21, 3
      %p61 = por %p59, %p60
      %p62 = scmp.ne.s32.totalorder %s54, %s57
      %p63 = scmp.eq.s32.totalorder %s21, 0
      %p64 = por %p62, %p63
      %p65 = scmp.ne.s32.totalorder %s54, %s57
      %p66 = scmp.eq.s32.totalorder %s26, 3
      %p67 = por %p65, %p66
      %p68 = scmp.ne.s32.totalorder %s57, %s58
      %p69 = scmp.eq.s32.totalorder %s26, 0
      %p70 = por %p68, %p69
      %p71 = scmp.ne.s32.totalorder %s57, %s58
      %p72 = scmp.eq.s32.totalorder %s27, 3
      %p73 = por %p71, %p72
      %p75 = scmp.ne.s32.totalorder %s58, %s74
      %p76 = scmp.eq.s32.totalorder %s27, 0
      %p77 = por %p75, %p76
      %s78 = ssub.s32 %s28, %s47
      %s79 = ssub.s32 %s30, %s39
      %s80 = sor.u32 %s78, %s79
      %p81 = scmp.eq.s32.totalorder %s80, 0
      %s83 = sadd.s32 %s82, 1
      %s84 = scalar_select %p81, %s82, %s83
      %p87 = pneg %p81
      %p88 = scmp.eq.s32.totalorder %s21, 3
      %p89 = por %p87, %p88
      %p90 = scmp.ne.s32.totalorder %s82, %s85
      %p91 = scmp.eq.s32.totalorder %s21, 0
      %p92 = por %p90, %p91
      %p93 = scmp.ne.s32.totalorder %s82, %s85
      %p94 = scmp.eq.s32.totalorder %s26, 3
      %p95 = por %p93, %p94
      %p96 = scmp.ne.s32.totalorder %s85, %s86
      %p97 = scmp.eq.s32.totalorder %s26, 0
      %p98 = por %p96, %p97
      %p99 = scmp.ne.s32.totalorder %s85, %s86
      %p100 = scmp.eq.s32.totalorder %s27, 3
      %p101 = por %p99, %p100
      %p103 = scmp.ne.s32.totalorder %s86, %s102
      %p104 = scmp.eq.s32.totalorder %s27, 0
      %p105 = por %p103, %p104
      %s106 = ssub.s32 %s28, %s47
      %s107 = ssub.s32 %s30, %s39
      %s108 = sor.u32 %s106, %s107
      %p109 = scmp.eq.s32.totalorder %s108, 0
      %s111 = sadd.s32 %s110, 1
      %s112 = scalar_select %p109, %s110, %s111
      %p115 = pneg %p109
      %p116 = scmp.eq.s32.totalorder %s21, 3
      %p117 = por %p115, %p116
      %p118 = scmp.ne.s32.totalorder %s110, %s113
      %p119 = scmp.eq.s32.totalorder %s21, 0
      %p120 = por %p118, %p119
      %p121 = scmp.ne.s32.totalorder %s110, %s113
      %p122 = scmp.eq.s32.totalorder %s26, 3
      %p123 = por %p121, %p122
      %p124 = scmp.ne.s32.totalorder %s113, %s114
      %p125 = scmp.eq.s32.totalorder %s26, 0
      %p126 = por %p124, %p125
      %p127 = scmp.ne.s32.totalorder %s113, %s114
      %p128 = scmp.eq.s32.totalorder %s27, 3
      %p129 = por %p127, %p128
      %p131 = scmp.ne.s32.totalorder %s114, %s130
      %p132 = scmp.eq.s32.totalorder %s27, 0
      %p133 = por %p131, %p132
      %s135 = sadd.s32 %s134, 1
      %p138 = scmp.eq.s32.totalorder %s21, 3
      %p139 = scmp.ne.s32.totalorder %s134, %s136
      %p140 = scmp.eq.s32.totalorder %s21, 0
      %p141 = por %p139, %p140
      %p142 = scmp.ne.s32.totalorder %s134, %s136
      %p143 = scmp.eq.s32.totalorder %s26, 3
      %p144 = por %p142, %p143
      %p145 = scmp.ne.s32.totalorder %s136, %s137
      %p146 = scmp.eq.s32.totalorder %s26, 0
      %p147 = por %p145, %p146
      %p148 = scmp.ne.s32.totalorder %s136, %s137
      %p149 = scmp.eq.s32.totalorder %s27, 3
      %p150 = por %p148, %p149
      %p152 = scmp.ne.s32.totalorder %s137, %s151
      %p153 = scmp.eq.s32.totalorder %s27, 0
      %p154 = por %p152, %p153
      %s156 = sadd.s32 %s155, 1
      %p159 = scmp.eq.s32.totalorder %s21, 3
      %p160 = scmp.ne.s32.totalorder %s155, %s157
      %p161 = scmp.eq.s32.totalorder %s21, 0
      %p162 = por %p160, %p161
      %p163 = scmp.ne.s32.totalorder %s155, %s157
      %p164 = scmp.eq.s32.totalorder %s26, 3
      %p165 = por %p163, %p164
      %p166 = scmp.ne.s32.totalorder %s157, %s158
      %p167 = scmp.eq.s32.totalorder %s26, 0
      %p168 = por %p166, %p167
      %p169 = scmp.ne.s32.totalorder %s157, %s158
      %p170 = scmp.eq.s32.totalorder %s27, 3
      %p171 = por %p169, %p170
      %p173 = scmp.ne.s32.totalorder %s158, %s172
      %p174 = scmp.eq.s32.totalorder %s27, 0
      %p175 = por %p173, %p174
      %s176 = ssub.s32 %s28, %s47
      %s177 = ssub.s32 %s29, %s43
      %s178 = sor.u32 %s176, %s177
      %p179 = scmp.eq.s32.totalorder %s178, 0
      %s181 = sadd.s32 %s180, 1
      %s182 = scalar_select %p179, %s180, %s181
      %p185 = pneg %p179
      %p186 = scmp.eq.s32.totalorder %s21, 3
      %p187 = por %p185, %p186
      %p188 = scmp.ne.s32.totalorder %s180, %s183
      %p189 = scmp.eq.s32.totalorder %s21, 0
      %p190 = por %p188, %p189
      %p191 = scmp.ne.s32.totalorder %s180, %s183
      %p192 = scmp.eq.s32.totalorder %s26, 3
      %p193 = por %p191, %p192
      %p194 = scmp.ne.s32.totalorder %s183, %s184
      %p195 = scmp.eq.s32.totalorder %s26, 0
      %p196 = por %p194, %p195
      %p197 = scmp.ne.s32.totalorder %s183, %s184
      %p198 = scmp.eq.s32.totalorder %s27, 3
      %p199 = por %p197, %p198
      %p201 = scmp.ne.s32.totalorder %s184, %s200
      %p202 = scmp.eq.s32.totalorder %s27, 0
      %p203 = por %p201, %p202
      %p204 = scmp.le.s32.totalorder 1, %s21
      %p205 = scmp.lt.s32.totalorder %s21, 5
      %p206 = pnand %p204, %p205
      %p207 = pneg %p206
      // Predicated region
      $region9: #{tpu_custom_call.1} parent=5 // pred_check
        _
      $region10: #{tpu_custom_call.1} parent=5 // pred_check_branch
        %209 = sbr.rel (%p206) target = $region12
      $region11: #{tpu_custom_call.1} parent=5 // pred_region
        %s210 = ssub.s32 %s21, 1
        // Predicated region
        $region13: #{tpu_custom_call.1} parent=11 // pred_check
          %p211 = pneg %p147
        $region14: #{tpu_custom_call.1} parent=11 // pred_check_branch
          %213 = sbr.rel (%p211) target = $region16
        $region15: #{tpu_custom_call.1} parent=11 // pred_region
          %s215 = ssub.s32 4096, 4096
          %216 = vsyncadd [#allocation10], %s215
          %s217 = sshll.u32 [#allocation9], 4
          %s218 = int_to_ptr.vmem [resolvable:$true] %s217
          %223 = dma.hbm_to_vmem [thread:$0]  %s3, 4096, %s218, [#allocation10], 128, 128, 8
        $region16: #{tpu_custom_call.1} parent=11 // pred_fallthru
          _
        // Predicated region
        $region17: #{tpu_custom_call.1} parent=11 // pred_check
          %p224 = pneg %p168
        $region18: #{tpu_custom_call.1} parent=11 // pred_check_branch
          %226 = sbr.rel (%p224) target = $region20
        $region19: #{tpu_custom_call.1} parent=11 // pred_region
          _
        $region20: #{tpu_custom_call.1} parent=11 // pred_fallthru
          _
      $region12: #{tpu_custom_call.1} parent=5 // pred_fallthru
        _
      %p227 = scmp.lt.s32.totalorder %s21, 4
      // Predicated region
      $region21: #{tpu_custom_call.1} parent=5 // pred_check
        %p228 = pneg %p227
      $region22: #{tpu_custom_call.1} parent=5 // pred_check_branch
        %230 = sbr.rel (%p228) target = $region24
      $region23: #{tpu_custom_call.1} parent=5 // pred_region
        // Predicated region
        $region25: #{tpu_custom_call.1} parent=23 // pred_check
          %p231 = pneg %p64
        $region26: #{tpu_custom_call.1} parent=23 // pred_check_branch
          %233 = sbr.rel (%p231) target = $region28
        $region27: #{tpu_custom_call.1} parent=23 // pred_region
          %s234 = sand.u32 %s54, 1
          %s235 = scalar_lea.sflag [#allocation4], %s234
          %s236 = sand.u32 %s54, 1
          %s237 = smul.addr %s236, 8
          %s238 = scalar_lea.vmem [#allocation3], %s237
          %s239 = smul.u32 2, %s29
          %s241 = ssub.s32 128, 128
          %242 = vsyncadd %s235, %s241
          %s243 = smul.addr %s30, 2
          %s244 = sadd.s32 %s239, %s243
          %s245 = smul.addr %s28, 4
          %s246 = sadd.s32 %s244, %s245
          %s247 = smul.addr %s246, 64
          %s248 = scalar_lea.hbm %s0, %s247
          %s249 = sshll.u32 %s238, 4
          %s250 = int_to_ptr.vmem [resolvable:$true] %s249
          %255 = dma.hbm_to_vmem [thread:$0]  %s248, 128, %s250, %s235, 64, 64, 4
        $region28: #{tpu_custom_call.1} parent=23 // pred_fallthru
          _
        // Predicated region
        $region29: #{tpu_custom_call.1} parent=23 // pred_check
          %p256 = pneg %p92
        $region30: #{tpu_custom_call.1} parent=23 // pred_check_branch
          %258 = sbr.rel (%p256) target = $region32
        $region31: #{tpu_custom_call.1} parent=23 // pred_region
          %s259 = sand.u32 %s21, 1
          %s260 = scalar_lea.sflag [#allocation7], %s259
          %s261 = sand.u32 %s82, 1
          %s262 = smul.addr %s261, 8
          %s263 = scalar_lea.vmem [#allocation6], %s262
          %s265 = ssub.s32 128, 128
          %266 = vsyncadd %s260, %s265
          %s267 = smul.addr %s30, 2
          %s268 = smul.addr %s28, 4
          %s269 = sadd.s32 %s267, %s268
          %s270 = smul.addr %s269, 64
          %s271 = scalar_lea.hbm %s1, %s270
          %s272 = sshll.u32 %s263, 4
          %s273 = int_to_ptr.vmem [resolvable:$true] %s272
          %278 = dma.hbm_to_vmem [thread:$0]  %s271, 128, %s273, %s260, 64, 64, 4
        $region32: #{tpu_custom_call.1} parent=23 // pred_fallthru
          _
        // Predicated region
        $region33: #{tpu_custom_call.1} parent=23 // pred_check
          %p279 = pneg %p120
        $region34: #{tpu_custom_call.1} parent=23 // pred_check_branch
          %281 = sbr.rel (%p279) target = $region36
        $region35: #{tpu_custom_call.1} parent=23 // pred_region
          %s282 = sand.u32 %s21, 1
          %s283 = scalar_lea.sflag [#allocation7], %s282
          %s284 = sand.u32 %s110, 1
          %s285 = smul.addr %s284, 8
          %s286 = scalar_lea.vmem [#allocation8], %s285
          %s288 = ssub.s32 128, 128
          %289 = vsyncadd %s283, %s288
          %s290 = smul.addr %s30, 2
          %s291 = smul.addr %s28, 4
          %s292 = sadd.s32 %s290, %s291
          %s293 = smul.addr %s292, 64
          %s294 = scalar_lea.hbm %s2, %s293
          %s295 = sshll.u32 %s286, 4
          %s296 = int_to_ptr.vmem [resolvable:$true] %s295
          %301 = dma.hbm_to_vmem [thread:$0]  %s294, 128, %s296, %s283, 64, 64, 4
        $region36: #{tpu_custom_call.1} parent=23 // pred_fallthru
          _
      $region24: #{tpu_custom_call.1} parent=5 // pred_fallthru
        _
      %p302 = scmp.le.s32.totalorder 1, %s21
      %p303 = scmp.lt.s32.totalorder %s21, 5
      %p304 = pnand %p302, %p303
      %p305 = pneg %p304
      // Predicated region
      $region37: #{tpu_custom_call.1} parent=5 // pred_check
        _
      $region38: #{tpu_custom_call.1} parent=5 // pred_check_branch
        %307 = sbr.rel (%p304) target = $region40
      $region39: #{tpu_custom_call.1} parent=5 // pred_region
        %s308 = ssub.s32 %s21, 1
        %s309 = sand.u32 %s57, 1
        %s310 = scalar_lea.sflag [#allocation4], %s309
        %s311 = sand.u32 %s57, 1
        %s312 = smul.addr %s311, 8
        %s313 = scalar_lea.vmem [#allocation3], %s312
        // Predicated region
        $region41: #{tpu_custom_call.1} parent=39 // pred_check
          %p314 = pneg %p70
        $region42: #{tpu_custom_call.1} parent=39 // pred_check_branch
          %316 = sbr.rel (%p314) target = $region44
        $region43: #{tpu_custom_call.1} parent=39 // pred_region
          %317 = dma.done %s310, 128
        $region44: #{tpu_custom_call.1} parent=39 // pred_fallthru
          _
        %s318 = sand.u32 %s26, 1
        %s319 = scalar_lea.sflag [#allocation7], %s318
        %s320 = sand.u32 %s85, 1
        %s321 = smul.addr %s320, 8
        %s322 = scalar_lea.vmem [#allocation6], %s321
        // Predicated region
        $region45: #{tpu_custom_call.1} parent=39 // pred_check
          %p323 = pneg %p98
        $region46: #{tpu_custom_call.1} parent=39 // pred_check_branch
          %325 = sbr.rel (%p323) target = $region48
        $region47: #{tpu_custom_call.1} parent=39 // pred_region
          %326 = dma.done %s319, 128
        $region48: #{tpu_custom_call.1} parent=39 // pred_fallthru
          _
        %s327 = sand.u32 %s26, 1
        %s328 = scalar_lea.sflag [#allocation7], %s327
        %s329 = sand.u32 %s113, 1
        %s330 = smul.addr %s329, 8
        %s331 = scalar_lea.vmem [#allocation8], %s330
        // Predicated region
        $region49: #{tpu_custom_call.1} parent=39 // pred_check
          %p332 = pneg %p126
        $region50: #{tpu_custom_call.1} parent=39 // pred_check_branch
          %334 = sbr.rel (%p332) target = $region52
        $region51: #{tpu_custom_call.1} parent=39 // pred_region
          %335 = dma.done %s328, 128
        $region52: #{tpu_custom_call.1} parent=39 // pred_fallthru
          _
        // Predicated region
        $region53: #{tpu_custom_call.1} parent=39 // pred_check
          %p336 = pneg %p147
        $region54: #{tpu_custom_call.1} parent=39 // pred_check_branch
          %338 = sbr.rel (%p336) target = $region56
        $region55: #{tpu_custom_call.1} parent=39 // pred_region
          %339 = dma.done [#allocation10], 4096
        $region56: #{tpu_custom_call.1} parent=39 // pred_fallthru
          _
        %s340 = sand.u32 %s57, 1
        %s341 = scalar_lea.sflag [#allocation4], %s340
        %s342 = sand.u32 %s57, 1
        %s343 = smul.addr %s342, 8
        %s344 = scalar_lea.vmem [#allocation3], %s343
        %p345 = pneg %p70
        %p346 = pneg %p67
        %s347 = sand.u32 %s26, 1
        %s348 = scalar_lea.sflag [#allocation7], %s347
        %s349 = sand.u32 %s85, 1
        %s350 = smul.addr %s349, 8
        %s351 = scalar_lea.vmem [#allocation6], %s350
        %p352 = pneg %p98
        %p353 = pneg %p95
        %s354 = sand.u32 %s26, 1
        %s355 = scalar_lea.sflag [#allocation7], %s354
        %s356 = sand.u32 %s113, 1
        %s357 = smul.addr %s356, 8
        %s358 = scalar_lea.vmem [#allocation8], %s357
        %p359 = pneg %p126
        %p360 = pneg %p123
        %p361 = pneg %p147
        %p362 = pneg %p144
        %p363 = pneg %p168
        %p364 = pneg %p165
        %p365 = pneg %p196
        %p366 = pneg %p193
        %s367 = sand.u32 %s183, 1
        %s368 = scalar_lea.sflag [#allocation5], %s367
        %s369 = sand.u32 %s183, 1
        %s370 = smul.addr %s369, 32
        %s371 = scalar_lea.vmem [#allocation11], %s370
        %s372 = smul.u32 2, %s32
        %s373 = smul.u32 2, %s32
        %v375 = vld [vmem:[%s313] sm:$0xf]
        %v376 = vld [vmem:[%s313 + $0x4] sm:$0xf]
        %v377 = vld [vmem:[%s322] sm:$0xf]
        %v378 = vld [vmem:[%s322 + $0x4] sm:$0xf]
        %v379 = vld [vmem:[%s331] sm:$0xf]
        %v380 = vld [vmem:[%s331 + $0x4] sm:$0xf]
        %v383 = vunpack.c.l.b16 %v375
        %v384 = vunpack.c.l.b16 %v376
        %v385 = vpack.c.b16 %v384, %v383
        %v389 = vunpack.c.l.b16 %v377
        %v390 = vunpack.c.l.b16 %v378
        %v391 = vpack.c.b16 %v390, %v389
        %393 = vmatprep.subr.bf16.mxu0 0
        %394 = vmatpush1.bf16.xpose.msra.mxu0 %v391
        %395 = vmatprep.subr.bf16.mxu0 0
        %396 = vmatpush1.bf16.xpose.msra.mxu0 0
        %397 = vmatprep.subr.bf16.mxu0 0
        %398 = vmatpush1.bf16.xpose.msra.mxu0 0
        %399 = vmatprep.subr.bf16.mxu0 0
        %400 = vmatpush1.bf16.xpose.msra.mxu0 0
        %401 = vmatprep.subr.bf16.mxu0 0
        %402 = vmatpush1.bf16.xpose.msra.mxu0 0
        %403 = vmatprep.subr.bf16.mxu0 0
        %404 = vmatpush1.bf16.xpose.msra.mxu0 0
        %405 = vmatprep.subr.bf16.mxu0 0
        %406 = vmatpush1.bf16.xpose.msra.mxu0 0
        %407 = vmatprep.subr.bf16.mxu0 0
        %408 = vmatpush1.bf16.xpose.msra.mxu0 0
        %409 = vmatprep.subr.bf16.mxu0 0
        %410 = vmatpush1.bf16.xpose.msra.mxu0 0
        %411 = vmatprep.subr.bf16.mxu0 0
        %412 = vmatpush1.bf16.xpose.msra.mxu0 0
        %413 = vmatprep.subr.bf16.mxu0 0
        %414 = vmatpush1.bf16.xpose.msra.mxu0 0
        %415 = vmatprep.subr.bf16.mxu0 0
        %416 = vmatpush1.bf16.xpose.msra.mxu0 0
        %417 = vmatprep.subr.bf16.mxu0 0
        %418 = vmatpush1.bf16.xpose.msra.mxu0 0
        %419 = vmatprep.subr.bf16.mxu0 0
        %420 = vmatpush1.bf16.xpose.msra.mxu0 0
        %421 = vmatprep.subr.bf16.mxu0 0
        %422 = vmatpush1.bf16.xpose.msra.mxu0 0
        %423 = vmatprep.subr.bf16.mxu0 0
        %424 = vmatpush1.bf16.xpose.msra.mxu0 0
        %425 = vmatprep.mubr.bf16.mxu0 0
        %426 = vmatmul.mubr.bf16.gmra.mrb[0].mxu0 %v385
        %v427 = vpop.f32.mrb[0].mxu0
        %v428 = vadd.f32 0.0, %v427
        %v429 = vpop.f32.mrb[0].mxu0
        %v430 = vpop.f32.mrb[0].mxu0
        %v431 = vadd.f32 0.0, %v430
        %v432 = vpop.f32.mrb[0].mxu0
        %433 = vdwg.mxu0
        %vm434 = vcmask 130048
        %v435 = vsel %vm434, %v428, -inf
        %436 = vmax.xlane.f32.xlu0 %v435
        %v437 = vpop.xlane.xlu0 %436
        %v438 = vsel %vm434, %v431, -inf
        %439 = vmax.xlane.f32.xlu0 %v438
        %v440 = vpop.xlane.xlu0 %439
        %v441 = vsub.f32 %v428, %v437
        %v442 = vsub.f32 %v431, %v440
        %v443 = vmul.f32 %v441, 1.442695
        %v444 = vpow.pop %v443
        %v445 = vmul.f32 %v442, 1.442695
        %v446 = vpow.pop %v445
        %v447 = vsel %vm434, %v444, 0.0
        %448 = vadd.xlane.f32.xlu0 %v447
        %v449 = vpop.xlane.xlu0 %448
        %v450 = vsel %vm434, %v446, 0.0
        %451 = vadd.xlane.f32.xlu0 %v450
        %v452 = vpop.xlane.xlu0 %451
        %v453 = vrcp.pop %v449
        %v454 = vrcp.pop %v452
        %v455 = vmul.f32 %v444, %v453
        %v456 = vmul.f32 %v446, %v454
        %v457 = vpack.c.bf16 %v456, %v455
        %v460 = vunpack.c.l.b16 %v379
        %v461 = vunpack.c.l.b16 %v380
        %v462 = vpack.c.b16 %v461, %v460
        %v465 = vsel %vm434, %v457, 0
        %467 = vmatprep.subr.bf16.mxu0 0
        %468 = vmatpush1.bf16.msra.mxu0 %v462
        %469 = vmatprep.subr.bf16.mxu0 0
        %470 = vmatpush1.bf16.msra.mxu0 0
        %471 = vmatprep.subr.bf16.mxu0 0
        %472 = vmatpush1.bf16.msra.mxu0 0
        %473 = vmatprep.subr.bf16.mxu0 0
        %474 = vmatpush1.bf16.msra.mxu0 0
        %475 = vmatprep.subr.bf16.mxu0 0
        %476 = vmatpush1.bf16.msra.mxu0 0
        %477 = vmatprep.subr.bf16.mxu0 0
        %478 = vmatpush1.bf16.msra.mxu0 0
        %479 = vmatprep.subr.bf16.mxu0 0
        %480 = vmatpush1.bf16.msra.mxu0 0
        %481 = vmatprep.subr.bf16.mxu0 0
        %482 = vmatpush1.bf16.msra.mxu0 0
        %483 = vmatprep.subr.bf16.mxu0 0
        %484 = vmatpush1.bf16.msra.mxu0 0
        %485 = vmatprep.subr.bf16.mxu0 0
        %486 = vmatpush1.bf16.msra.mxu0 0
        %487 = vmatprep.subr.bf16.mxu0 0
        %488 = vmatpush1.bf16.msra.mxu0 0
        %489 = vmatprep.subr.bf16.mxu0 0
        %490 = vmatpush1.bf16.msra.mxu0 0
        %491 = vmatprep.subr.bf16.mxu0 0
        %492 = vmatpush1.bf16.msra.mxu0 0
        %493 = vmatprep.subr.bf16.mxu0 0
        %494 = vmatpush1.bf16.msra.mxu0 0
        %495 = vmatprep.subr.bf16.mxu0 0
        %496 = vmatpush1.bf16.msra.mxu0 0
        %497 = vmatprep.subr.bf16.mxu0 0
        %498 = vmatpush1.bf16.msra.mxu0 0
        %499 = vmatprep.mubr.bf16.mxu0 0
        %500 = vmatmul.mubr.bf16.gmra.mrb[0].mxu0 %v465
        %v501 = vpop.f32.mrb[0].mxu0
        %v502 = vadd.f32 0.0, %v501
        %v503 = vpop.f32.mrb[0].mxu0
        %v504 = vpop.f32.mrb[0].mxu0
        %v505 = vadd.f32 0.0, %v504
        %v506 = vpop.f32.mrb[0].mxu0
        %507 = vdwg.mxu0
        %v508 = vpack.c.bf16 %v505, %v502
        %s509 = smul.u32 %s33, 32
        %s510 = smul.addr %s509, 4
        %s511 = scalar_lea.vmem [#allocation9], %s510
        %v512 = vld [vmem:[%s511] sm:$0xff]
        %v513 = vld [vmem:[%s511 + $0x8] sm:$0xff]
        %v514 = vld [vmem:[%s511 + $0x10] sm:$0xff]
        %v515 = vld [vmem:[%s511 + $0x18] sm:$0xff]
        %v516 = vld [vmem:[%s511 + $0x20] sm:$0xff]
        %v517 = vld [vmem:[%s511 + $0x28] sm:$0xff]
        %v518 = vld [vmem:[%s511 + $0x30] sm:$0xff]
        %v519 = vld [vmem:[%s511 + $0x38] sm:$0xff]
        %v520 = vld [vmem:[%s511 + $0x40] sm:$0xff]
        %v521 = vld [vmem:[%s511 + $0x48] sm:$0xff]
        %v522 = vld [vmem:[%s511 + $0x50] sm:$0xff]
        %v523 = vld [vmem:[%s511 + $0x58] sm:$0xff]
        %v524 = vld [vmem:[%s511 + $0x60] sm:$0xff]
        %v525 = vld [vmem:[%s511 + $0x68] sm:$0xff]
        %v526 = vld [vmem:[%s511 + $0x70] sm:$0xff]
        %v527 = vld [vmem:[%s511 + $0x78] sm:$0xff]
        %v544 = vunpack.c.l.b16 %v512
        %v545 = vunpack.c.h.b16 %v512
        %v546 = vunpack.c.l.b16 %v513
        %v547 = vunpack.c.h.b16 %v513
        %v548 = vunpack.c.l.b16 %v514
        %v549 = vunpack.c.h.b16 %v514
        %v550 = vunpack.c.l.b16 %v515
        %v551 = vunpack.c.h.b16 %v515
        %v552 = vunpack.c.l.b16 %v516
        %v553 = vunpack.c.h.b16 %v516
        %v554 = vunpack.c.l.b16 %v517
        %v555 = vunpack.c.h.b16 %v517
        %v556 = vunpack.c.l.b16 %v518
        %v557 = vunpack.c.h.b16 %v518
        %v558 = vunpack.c.l.b16 %v519
        %v559 = vunpack.c.h.b16 %v519
        %v560 = vunpack.c.l.b16 %v520
        %v561 = vunpack.c.h.b16 %v520
        %v562 = vunpack.c.l.b16 %v521
        %v563 = vunpack.c.h.b16 %v521
        %v564 = vunpack.c.l.b16 %v522
        %v565 = vunpack.c.h.b16 %v522
        %v566 = vunpack.c.l.b16 %v523
        %v567 = vunpack.c.h.b16 %v523
        %v568 = vunpack.c.l.b16 %v524
        %v569 = vunpack.c.h.b16 %v524
        %v570 = vunpack.c.l.b16 %v525
        %v571 = vunpack.c.h.b16 %v525
        %v572 = vunpack.c.l.b16 %v526
        %v573 = vunpack.c.h.b16 %v526
        %v574 = vunpack.c.l.b16 %v527
        %v575 = vunpack.c.h.b16 %v527
        %v576 = vpack.c.b16 %v546, %v544
        %v577 = vpack.c.b16 %v547, %v545
        %v578 = vpack.c.b16 %v550, %v548
        %v579 = vpack.c.b16 %v551, %v549
        %v580 = vpack.c.b16 %v554, %v552
        %v581 = vpack.c.b16 %v555, %v553
        %v582 = vpack.c.b16 %v558, %v556
        %v583 = vpack.c.b16 %v559, %v557
        %v584 = vpack.c.b16 %v562, %v560
        %v585 = vpack.c.b16 %v563, %v561
        %v586 = vpack.c.b16 %v566, %v564
        %v587 = vpack.c.b16 %v567, %v565
        %v588 = vpack.c.b16 %v570, %v568
        %v589 = vpack.c.b16 %v571, %v569
        %v590 = vpack.c.b16 %v574, %v572
        %v591 = vpack.c.b16 %v575, %v573
        %608 = vmatprep.subr.bf16.mxu0 %v577
        %609 = vmatpush1.bf16.msra.mxu0 %v576
        %610 = vmatprep.subr.bf16.mxu0 %v579
        %611 = vmatpush1.bf16.msra.mxu0 %v578
        %612 = vmatprep.subr.bf16.mxu0 %v581
        %613 = vmatpush1.bf16.msra.mxu0 %v580
        %614 = vmatprep.subr.bf16.mxu0 %v583
        %615 = vmatpush1.bf16.msra.mxu0 %v582
        %616 = vmatprep.subr.bf16.mxu0 %v585
        %617 = vmatpush1.bf16.msra.mxu0 %v584
        %618 = vmatprep.subr.bf16.mxu0 %v587
        %619 = vmatpush1.bf16.msra.mxu0 %v586
        %620 = vmatprep.subr.bf16.mxu0 %v589
        %621 = vmatpush1.bf16.msra.mxu0 %v588
        %622 = vmatprep.subr.bf16.mxu0 %v591
        %623 = vmatpush1.bf16.msra.mxu0 %v590
        %624 = vmatprep.subr.bf16.mxu0 0
        %625 = vmatpush1.bf16.msra.mxu0 0
        %626 = vmatprep.subr.bf16.mxu0 0
        %627 = vmatpush1.bf16.msra.mxu0 0
        %628 = vmatprep.subr.bf16.mxu0 0
        %629 = vmatpush1.bf16.msra.mxu0 0
        %630 = vmatprep.subr.bf16.mxu0 0
        %631 = vmatpush1.bf16.msra.mxu0 0
        %632 = vmatprep.subr.bf16.mxu0 0
        %633 = vmatpush1.bf16.msra.mxu0 0
        %634 = vmatprep.subr.bf16.mxu0 0
        %635 = vmatpush1.bf16.msra.mxu0 0
        %636 = vmatprep.subr.bf16.mxu0 0
        %637 = vmatpush1.bf16.msra.mxu0 0
        %638 = vmatprep.subr.bf16.mxu0 0
        %639 = vmatpush1.bf16.msra.mxu0 0
        %640 = vmatprep.mubr.bf16.mxu0 0
        %641 = vmatmul.mubr.bf16.gmra.mrb[0].mxu0 %v508
        %v642 = vpop.f32.mrb[0].mxu0
        %v643 = vadd.f32 0.0, %v642
        %v644 = vpop.f32.mrb[0].mxu0
        %v645 = vadd.f32 0.0, %v644
        %v646 = vpop.f32.mrb[0].mxu0
        %v647 = vadd.f32 0.0, %v646
        %v648 = vpop.f32.mrb[0].mxu0
        %v649 = vadd.f32 0.0, %v648
        %650 = vdwg.mxu0
        %p651 = scmp.eq.s32.totalorder %s33, 0
        // Predicated region
        $region57: #{tpu_custom_call.1} parent=39 // pred_check
          %p652 = pneg %p651
        $region58: #{tpu_custom_call.1} parent=39 // pred_check_branch
          %654 = sbr.rel (%p652) target = $region60
        $region59: #{tpu_custom_call.1} parent=39 // pred_region
          %v655 = vld [vmem:[%s4] sm:$0x3]
          %v657 = vlaneseq
          %v658 = vshrl.u32 %v657, 7
          %v659 = vsub.s32 0, %v658
          %v660 = vrot.slane %v655, %v659
          %v661 = vlaneseq
          %v662 = vshrl.u32 %v661, 7
          %v663 = vsub.s32 1, %v662
          %v664 = vrot.slane %v655, %v663
          %v667 = vadd.f32 %v643, %v660
          %v668 = vadd.f32 %v645, %v664
          %v669 = vadd.f32 %v647, %v660
          %v670 = vadd.f32 %v649, %v664
          %671 = vst [vmem:[#allocation2] sm:$0xff] %v667
          %672 = vst [vmem:[#allocation2 + $0x8] sm:$0xff] %v668
          %673 = vst [vmem:[#allocation2 + $0x10] sm:$0xff] %v669
          %674 = vst [vmem:[#allocation2 + $0x18] sm:$0xff] %v670
        $region60: #{tpu_custom_call.1} parent=39 // pred_fallthru
          _
        %p675 = scmp.gt.s32.totalorder %s33, 0
        // Predicated region
        $region61: #{tpu_custom_call.1} parent=39 // pred_check
          %p676 = pneg %p675
        $region62: #{tpu_custom_call.1} parent=39 // pred_check_branch
          %678 = sbr.rel (%p676) target = $region64
        $region63: #{tpu_custom_call.1} parent=39 // pred_region
          %v679 = vld [vmem:[#allocation2] sm:$0xff]
          %v680 = vld [vmem:[#allocation2 + $0x8] sm:$0xff]
          %v681 = vld [vmem:[#allocation2 + $0x10] sm:$0xff]
          %v682 = vld [vmem:[#allocation2 + $0x18] sm:$0xff]
          %v683 = vadd.f32 %v679, %v643
          %v684 = vadd.f32 %v680, %v645
          %v685 = vadd.f32 %v681, %v647
          %v686 = vadd.f32 %v682, %v649
          %687 = vst [vmem:[#allocation2] sm:$0xff] %v683
          %688 = vst [vmem:[#allocation2 + $0x8] sm:$0xff] %v684
          %689 = vst [vmem:[#allocation2 + $0x10] sm:$0xff] %v685
          %690 = vst [vmem:[#allocation2 + $0x18] sm:$0xff] %v686
        $region64: #{tpu_custom_call.1} parent=39 // pred_fallthru
          _
        %p691 = scmp.eq.s32.totalorder %s33, 1
        // Predicated region
        $region65: #{tpu_custom_call.1} parent=39 // pred_check
          %p692 = pneg %p691
        $region66: #{tpu_custom_call.1} parent=39 // pred_check_branch
          %694 = sbr.rel (%p692) target = $region68
        $region67: #{tpu_custom_call.1} parent=39 // pred_region
          %v695 = vld [vmem:[#allocation2] sm:$0xff]
          %v696 = vld [vmem:[#allocation2 + $0x8] sm:$0xff]
          %v697 = vld [vmem:[#allocation2 + $0x10] sm:$0xff]
          %v698 = vld [vmem:[#allocation2 + $0x18] sm:$0xff]
          %699 = vst [vmem:[%s371] sm:$0xff] %v695
          %700 = vst [vmem:[%s371 + $0x8] sm:$0xff] %v696
          %701 = vst [vmem:[%s371 + $0x10] sm:$0xff] %v697
          %702 = vst [vmem:[%s371 + $0x18] sm:$0xff] %v698
        $region68: #{tpu_custom_call.1} parent=39 // pred_fallthru
          _
        %s703 = sand.u32 %s183, 1
        %s704 = scalar_lea.sflag [#allocation5], %s703
        %s705 = sand.u32 %s183, 1
        %s706 = smul.addr %s705, 32
        %s707 = scalar_lea.vmem [#allocation11], %s706
        // Predicated region
        $region69: #{tpu_custom_call.1} parent=39 // pred_check
          %p708 = pneg %p193
        $region70: #{tpu_custom_call.1} parent=39 // pred_check_branch
          %710 = sbr.rel (%p708) target = $region72
        $region71: #{tpu_custom_call.1} parent=39 // pred_region
          %s711 = smul.u32 2, %s32
          %s713 = ssub.s32 512, 512
          %714 = vsyncadd %s704, %s713
          %s715 = smul.addr %s711, 2
          %s716 = smul.addr %s31, 4
          %s717 = sadd.s32 %s715, %s716
          %s718 = smul.addr %s717, 128
          %s719 = scalar_lea.hbm %s5, %s718
          %s720 = sshll.u32 %s707, 4
          %s721 = int_to_ptr.vmem [resolvable:$true] %s720
          %726 = dma.vmem_to_hbm [thread:$0]  %s721, 512, %s719, %s704, 256, 256, 16
        $region72: #{tpu_custom_call.1} parent=39 // pred_fallthru
          _
      $region40: #{tpu_custom_call.1} parent=5 // pred_fallthru
        _
      %p727 = scmp.le.s32.totalorder 2, %s21
      // Predicated region
      $region73: #{tpu_custom_call.1} parent=5 // pred_check
        %p728 = pneg %p727
      $region74: #{tpu_custom_call.1} parent=5 // pred_check_branch
        %730 = sbr.rel (%p728) target = $region76
      $region75: #{tpu_custom_call.1} parent=5 // pred_region
        %s731 = ssub.s32 %s21, 2
        // Predicated region
        $region77: #{tpu_custom_call.1} parent=75 // pred_check
          %p732 = pneg %p199
        $region78: #{tpu_custom_call.1} parent=75 // pred_check_branch
          %734 = sbr.rel (%p732) target = $region80
        $region79: #{tpu_custom_call.1} parent=75 // pred_region
          %s735 = sand.u32 %s184, 1
          %s736 = scalar_lea.sflag [#allocation5], %s735
          %s737 = sand.u32 %s184, 1
          %s738 = smul.addr %s737, 32
          %s739 = scalar_lea.vmem [#allocation11], %s738
          %740 = dma.done %s736, 512
        $region80: #{tpu_custom_call.1} parent=75 // pred_fallthru
          _
      $region76: #{tpu_custom_call.1} parent=5 // pred_fallthru
        _
    $region6: #{tpu_custom_call.1} parent=1 // loop_footer
      %s25 = sadd.s32 1, %s21
    $region7: #{tpu_custom_call.1} parent=1 // loop_footer_branch
      %20 = sbr.rel target = $region3
    $region8: #{tpu_custom_call.1} parent=1 // loop_exit
      _
    %741 = vsyncpa [#allocation4], 1
    %s742 = scalar_lea.sflag [#allocation4], 1
    %743 = vsyncpa %s742, 1
    %744 = vsyncpa [#allocation7], 1
    %s745 = scalar_lea.sflag [#allocation7], 1
    %746 = vsyncpa %s745, 1
    %747 = vsyncpa [#allocation10], 1
    %748 = vsyncpa [#allocation5], 1
    %s749 = scalar_lea.sflag [#allocation5], 1
    %750 = vsyncpa %s749, 1

</llo_original>
